<compile_context>
chip_gen: v7x
topology: tpu7x:2x2x1
jax: 0.10.0
libtpu: 0.0.40
codegen_flags: <defaults>
</compile_context>

<pallas_src>
import functools

import jax
import jax.numpy as jnp
from jax.experimental import pallas as pl
from jax.experimental.pallas import tpu as pltpu


def _dino_loss_kernel(student_ref, teacher_ref, center_ref,
                      loss_acc_ref, tsum_ref,
                      *, inv_student_temp, inv_teacher_temp,
                      tile_n, steps_per_split, n_rows):
    i = pl.program_id(0)                     # split index
    j = pl.program_id(1)                     # reduction step inside the split
    tile_idx = i * steps_per_split + j       # un-clamped logical tile index

    @pl.when(j == 0)
    def _():
        loss_acc_ref[...] = jnp.zeros_like(loss_acc_ref)
        tsum_ref[...] = jnp.zeros_like(tsum_ref)

    # --- student log-softmax pieces (full log_p never materialized) ---------
    s = student_ref[...].astype(jnp.float32) * inv_student_temp
    s_max = jnp.max(s, axis=-1, keepdims=True)
    s_shift = s - s_max
    s_lse = jnp.log(jnp.sum(jnp.exp(s_shift), axis=-1, keepdims=True))

    # --- teacher softmax numerator / denominator (q never materialized) -----
    t_raw = teacher_ref[...].astype(jnp.float32)
    t = (t_raw - center_ref[...]) * inv_teacher_temp
    t_max = jnp.max(t, axis=-1, keepdims=True)
    t_exp = jnp.exp(t - t_max)
    t_sum = jnp.sum(t_exp, axis=-1, keepdims=True)

    # ce = -sum(q * log_p) = s_lse - sum(t_exp * s_shift) / sum(t_exp)
    weighted = jnp.sum(t_exp * s_shift, axis=-1, keepdims=True)
    ce = s_lse - weighted * pl.reciprocal(t_sum, approx=False)     # (tile_n, 1)

    e_dim = t_raw.shape[-1]

    def fold8(x):
        # column sums folded by groups of 8 sublanes (cheap VPU adds); the
        # final 8 -> 1 sublane collapse happens once, outside the kernel.
        return jnp.sum(x.reshape(tile_n // 8, 8, e_dim), axis=0)

    # Fast path: the whole tile is in-bounds (the common case) -> no masking.
    fully_valid = (tile_idx + 1) * tile_n <= n_rows

    @pl.when(fully_valid)
    def _():
        loss_acc_ref[...] += jnp.sum(ce)          # scalar broadcast into (8,128)
        tsum_ref[...] += fold8(t_raw)

    # Slow path: boundary tile (N not a multiple of tile_n) or a duplicated
    # clamped tile; mask rows >= N for BOTH the loss and the teacher col-sum
    # (their contents are unspecified, possibly NaN -> use where, not *0).
    @pl.when(jnp.logical_not(fully_valid))
    def _():
        row_ids = jax.lax.broadcasted_iota(jnp.int32, (tile_n, 1), 0)
        valid = (tile_idx * tile_n + row_ids) < n_rows
        loss_acc_ref[...] += jnp.sum(jnp.where(valid, ce, 0.0))
        tsum_ref[...] += fold8(jnp.where(valid, t_raw, 0.0))


def _vmem_capacity_bytes():
    try:
        info = pltpu.get_tpu_info()
        cap = int(getattr(info, "vmem_capacity_bytes", 0) or 0)
        if cap > 0:
            return cap
    except Exception:
        pass
    # Fallback: assume a 128 MiB part (v5e/v6e class).  v7x-class parts are
    # expected to report their (smaller) capacity via get_tpu_info.
    return 128 << 20


def _round_up(x, m):
    return ((x + m - 1) // m) * m


def _cdiv(a, b):
    return (a + b - 1) // b


def dino_loss(student_output, teacher_output, center,
              teacher_temp, student_temp=0.1, center_momentum=0.9):
    """Returns (loss_scalar, new_center).

    Inputs are (B, T, E); center is (1, E).  Feeding bf16 student/teacher
    halves HBM traffic (the kernel upcasts to f32 internally).
    """
    assert student_output.shape == teacher_output.shape
    assert student_output.ndim == 3
    B, T, E = student_output.shape
    N = B * T

    student = student_output.reshape(N, E)           # no-copy view
    teacher = teacher_output.reshape(N, E)           # no-copy view
    center = center.astype(jnp.float32)

    in_itemsize = jnp.dtype(student.dtype).itemsize
    vmem_cap = _vmem_capacity_bytes()

    # 64 MiB-class parts (v7x): triple-buffer the streaming inputs to hide the
    # extra per-step DMA issue latency of the (necessarily) smaller tiles.
    n_buf = 3 if vmem_cap <= (64 << 20) else 2

    # ---- byte-targeted row tile, budgeted against VMEM incl. f32 temps -----
    INTERM_F32 = 6                                     # (tile_n, E) f32 temporaries
    usable = (vmem_cap * 3) // 4                       # 25% headroom for Mosaic
    bytes_per_row = E * (2 * n_buf * in_itemsize + INTERM_F32 * 4)
    tile_n_vmem = usable // max(bytes_per_row, 1)
    tile_n_target = (8 << 20) // max(E * in_itemsize, 1)   # ~8 MiB per input block
    tile_n = min(int(tile_n_vmem), int(tile_n_target), _round_up(N, 8))
    tile_n = max(8, (tile_n // 8) * 8)

    # ---- split the row reduction in two (both TCs on multi-core parts) -----
    # TODO(synk): verify axis 0 actually shards across both v7x TensorCores;
    # if not, switch to pltpu.CORE_PARALLEL / pl.core_map with a queried core
    # count (plain "parallel" is a no-op on single-TC chips, so this is safe).
    n_tiles = _cdiv(N, tile_n)
    n_splits = 2 if n_tiles >= 2 else 1
    steps_per_split = _cdiv(n_tiles, n_splits)

    # ---- scoped-VMEM limit consistent with the tiling above ----------------
    tile_in_bytes = tile_n * E * in_itemsize
    vmem_needed = (2 * n_buf * tile_in_bytes           # student+teacher buffers
                   + INTERM_F32 * tile_n * E * 4       # f32 elementwise temps
                   + 2 * E * 4                         # resident center block
                   + 2 * (8 * 128 * 4 + 8 * E * 4))    # output accumulator blocks
    vmem_limit = int(min(vmem_cap - (4 << 20),
                         max(vmem_needed + (8 << 20), 32 << 20)))

    kernel = functools.partial(
        _dino_loss_kernel,
        inv_student_temp=1.0 / float(student_temp),
        inv_teacher_temp=1.0 / float(teacher_temp),
        tile_n=tile_n,
        steps_per_split=steps_per_split,
        n_rows=N,
    )

    # Clamp the block index so duplicated / overhanging steps never DMA from
    # past the end of the array (their rows are masked in-kernel).
    def row_map(i, j):
        return (jnp.minimum(i * steps_per_split + j, n_tiles - 1), 0)

    stream_kwargs = {}
    if n_buf == 3 and steps_per_split >= 3:
        stream_kwargs["pipeline_mode"] = pl.Buffered(3)
    stream_spec = pl.BlockSpec((tile_n, E), row_map, **stream_kwargs)

    loss_part, tsum_part = pl.pallas_call(
        kernel,
        out_shape=(jax.ShapeDtypeStruct((n_splits * 8, 128), jnp.float32),
                   jax.ShapeDtypeStruct((n_splits * 8, E), jnp.float32)),
        grid_spec=pltpu.PrefetchScalarGridSpec(
            num_scalar_prefetch=0,
            grid=(n_splits, steps_per_split),
            in_specs=[
                stream_spec,                                   # student rows
                stream_spec,                                   # teacher rows
                pl.BlockSpec((1, E), lambda i, j: (0, 0)),     # center (resident)
            ],
            out_specs=[
                pl.BlockSpec((8, 128), lambda i, j: (i, 0)),   # lane-dense loss acc
                pl.BlockSpec((8, E), lambda i, j: (i, 0)),     # teacher col-sum acc
            ],
        ),
        compiler_params=pltpu.CompilerParams(
            dimension_semantics=("parallel", "arbitrary"),
            vmem_limit_bytes=vmem_limit),
    )(student, teacher, center)

    # finalize (tiny): scalar mean, sublane collapse, center EMA.
    inv_n = 1.0 / float(N)
    # every element of a split's (8,128) block equals that split's loss sum
    loss = jnp.sum(loss_part[0::8, 0]) * inv_n
    batch_center = jnp.sum(tsum_part, axis=0, keepdims=True) * inv_n     # (1, E)
    new_center = (center * center_momentum
                  + batch_center * (1.0 - center_momentum))
    return loss, new_center


def _reference(student_output, teacher_output, center,
               teacher_temp, student_temp=0.1, center_momentum=0.9):
    B, T, E = student_output.shape
    s = student_output.reshape(B * T, E).astype(jnp.float32)
    t = teacher_output.reshape(B * T, E).astype(jnp.float32)
    log_p = jax.nn.log_softmax(s / student_temp, axis=-1)
    q = jax.nn.softmax((t - center) / teacher_temp, axis=-1)
    loss = jnp.mean(jnp.sum(-q * log_p, axis=-1))
    new_center = center * center_momentum + jnp.mean(t, axis=0) * (1.0 - center_momentum)
    return loss, new_center


if __name__ == "__main__":
    # small shapes consistent with (batch, tokens, embedding)
    B, T, E = 2, 8, 32
    teacher_temp = 0.04
    student_temp = 0.1
    center_momentum = 0.9

    key = jax.random.PRNGKey(0)
    k1, k2 = jax.random.split(key)
    student_output = jax.random.normal(k1, (B, T, E), dtype=jnp.float32)
    teacher_output = jax.random.normal(k2, (B, T, E), dtype=jnp.float32)
    center = jnp.zeros((1, E), dtype=jnp.float32)   # register_buffer('center', zeros(1, out_dim))

    loss, new_center = dino_loss(student_output, teacher_output, center,
                                 teacher_temp, student_temp, center_momentum)
    loss = jax.block_until_ready(loss)
    new_center = jax.block_until_ready(new_center)

    ref_loss, ref_center = _reference(student_output, teacher_output, center,
                                      teacher_temp, student_temp, center_momentum)

    assert jnp.allclose(loss, ref_loss, atol=1e-4, rtol=1e-4), (loss, ref_loss)
    assert jnp.allclose(new_center, ref_center, atol=1e-5, rtol=1e-5)

    print("KERNEL_OK")
</pallas_src>

<mosaic_0001>
module attributes {stable_mosaic.version = 11 : i64} {
  func.func @_dino_loss_kernel(%arg0: i32, %arg1: i32, %arg2: memref<16x32xf32, #tpu.memory_space<vmem>>, %arg3: memref<16x32xf32, #tpu.memory_space<vmem>>, %arg4: memref<1x32xf32, #tpu.memory_space<vmem>>, %arg5: memref<8x128xf32, #tpu.memory_space<vmem>>, %arg6: memref<8x32xf32, #tpu.memory_space<vmem>>) attributes {dimension_semantics = [#tpu.dimension_semantics<parallel>, #tpu.dimension_semantics<arbitrary>], iteration_bounds = array<i64: 1, 1>, scalar_prefetch = 0 : i64, scratch_operands = 0 : i64, tpu.core_type = #tpu.core_type<tc>, window_params = [{transform_indices = @transform_0, window_bounds = array<i64: 16, 32>}, {transform_indices = @transform_1, window_bounds = array<i64: 16, 32>}, {pipeline_mode = #tpu.pipeline_mode<synchronous>, transform_indices = @transform_2, window_bounds = array<i64: 1, 32>}, {transform_indices = @transform_3, window_bounds = array<i64: 8, 128>}, {transform_indices = @transform_4, window_bounds = array<i64: 8, 32>}]} {
    %c1_i32 = arith.constant 1 : i32
    %0 = arith.muli %arg0, %c1_i32 : i32
    %1 = arith.addi %0, %arg1 : i32
    %c0_i32 = arith.constant 0 : i32
    %2 = arith.cmpi eq, %arg1, %c0_i32 : i32
    %3 = arith.extui %2 : i1 to i32
    %c0_i32_0 = arith.constant 0 : i32
    %4 = arith.cmpi ne, %3, %c0_i32_0 : i32
    scf.if %4 {
      %cst_16 = arith.constant 0.000000e+00 : f32
      %43 = vector.broadcast %cst_16 : f32 to vector<8x128xf32>
      %c0_17 = arith.constant 0 : index
      %c0_18 = arith.constant 0 : index
      %44 = vector.load %arg5[%c0_17, %c0_18] : memref<8x128xf32, #tpu.memory_space<vmem>>, vector<8x128xf32>
      tpu.vector_store %arg5[%c0_17, %c0_18], %43 {strides = array<i32>} : memref<8x128xf32, #tpu.memory_space<vmem>>, vector<8x128xf32>,
      %cst_19 = arith.constant 0.000000e+00 : f32
      %45 = vector.broadcast %cst_19 : f32 to vector<8x32xf32>
      %c0_20 = arith.constant 0 : index
      %c0_21 = arith.constant 0 : index
      %46 = vector.load %arg6[%c0_20, %c0_21] : memref<8x32xf32, #tpu.memory_space<vmem>>, vector<8x32xf32>
      tpu.vector_store %arg6[%c0_20, %c0_21], %45 {strides = array<i32>} : memref<8x32xf32, #tpu.memory_space<vmem>>, vector<8x32xf32>,
    } else {
    }
    %c0 = arith.constant 0 : index
    %c0_1 = arith.constant 0 : index
    %5 = vector.load %arg2[%c0, %c0_1] : memref<16x32xf32, #tpu.memory_space<vmem>>, vector<16x32xf32>
    %cst = arith.constant 1.000000e+01 : f32
    %6 = vector.broadcast %cst : f32 to vector<16x32xf32>
    %7 = arith.mulf %5, %6 : vector<16x32xf32>
    %cst_2 = arith.constant dense<0xFF800000> : vector<16xf32>
    %8 = vector.multi_reduction <maximumf>, %7, %cst_2 [1] : vector<16x32xf32> to vector<16xf32>
    %9 = vector.shape_cast %8 : vector<16xf32> to vector<16x1xf32>
    %10 = vector.broadcast %9 : vector<16x1xf32> to vector<16x32xf32>
    %11 = arith.subf %7, %10 : vector<16x32xf32>
    %12 = math.exp %11 : vector<16x32xf32>
    %cst_3 = arith.constant dense<0.000000e+00> : vector<16xf32>
    %13 = vector.multi_reduction <add>, %12, %cst_3 [1] : vector<16x32xf32> to vector<16xf32>
    %14 = vector.shape_cast %13 : vector<16xf32> to vector<16x1xf32>
    %15 = math.log %14 : vector<16x1xf32>
    %c0_4 = arith.constant 0 : index
    %c0_5 = arith.constant 0 : index
    %16 = vector.load %arg3[%c0_4, %c0_5] : memref<16x32xf32, #tpu.memory_space<vmem>>, vector<16x32xf32>
    %c0_6 = arith.constant 0 : index
    %c0_7 = arith.constant 0 : index
    %17 = vector.load %arg4[%c0_6, %c0_7] : memref<1x32xf32, #tpu.memory_space<vmem>>, vector<1x32xf32>
    %18 = vector.broadcast %17 : vector<1x32xf32> to vector<16x32xf32>
    %19 = arith.subf %16, %18 : vector<16x32xf32>
    %cst_8 = arith.constant 2.500000e+01 : f32
    %20 = vector.broadcast %cst_8 : f32 to vector<16x32xf32>
    %21 = arith.mulf %19, %20 : vector<16x32xf32>
    %cst_9 = arith.constant dense<0xFF800000> : vector<16xf32>
    %22 = vector.multi_reduction <maximumf>, %21, %cst_9 [1] : vector<16x32xf32> to vector<16xf32>
    %23 = vector.shape_cast %22 : vector<16xf32> to vector<16x1xf32>
    %24 = vector.broadcast %23 : vector<16x1xf32> to vector<16x32xf32>
    %25 = arith.subf %21, %24 : vector<16x32xf32>
    %26 = math.exp %25 : vector<16x32xf32>
    %cst_10 = arith.constant dense<0.000000e+00> : vector<16xf32>
    %27 = vector.multi_reduction <add>, %26, %cst_10 [1] : vector<16x32xf32> to vector<16xf32>
    %28 = vector.shape_cast %27 : vector<16xf32> to vector<16x1xf32>
    %29 = arith.mulf %26, %11 : vector<16x32xf32>
    %cst_11 = arith.constant dense<0.000000e+00> : vector<16xf32>
    %30 = vector.multi_reduction <add>, %29, %cst_11 [1] : vector<16x32xf32> to vector<16xf32>
    %31 = vector.shape_cast %30 : vector<16xf32> to vector<16x1xf32>
    %32 = tpu.reciprocal %28 : vector<16x1xf32> -> vector<16x1xf32>
    %33 = arith.mulf %31, %32 : vector<16x1xf32>
    %34 = arith.subf %15, %33 : vector<16x1xf32>
    %c1_i32_12 = arith.constant 1 : i32
    %35 = arith.addi %1, %c1_i32_12 : i32
    %c16_i32 = arith.constant 16 : i32
    %36 = arith.muli %35, %c16_i32 : i32
    %c16_i32_13 = arith.constant 16 : i32
    %37 = arith.cmpi sle, %36, %c16_i32_13 : i32
    %38 = arith.extui %37 : i1 to i32
    %c0_i32_14 = arith.constant 0 : i32
    %39 = arith.cmpi ne, %38, %c0_i32_14 : i32
    scf.if %39 {
      %c0_16 = arith.constant 0 : index
      %c0_17 = arith.constant 0 : index
      %43 = vector.load %arg5[%c0_16, %c0_17] : memref<8x128xf32, #tpu.memory_space<vmem>>, vector<8x128xf32>
      %44 = vector.shape_cast %34 : vector<16x1xf32> to vector<1x16x1xf32>
      %cst_18 = arith.constant dense<0.000000e+00> : vector<1xf32>
      %45 = vector.multi_reduction <add>, %44, %cst_18 [1, 2] : vector<1x16x1xf32> to vector<1xf32>
      %46 = vector.shape_cast %45 : vector<1xf32> to vector<1x1x1xf32>
      %47 = vector.extract %46[0, 0, 0] : f32 from vector<1x1x1xf32>
      %48 = vector.broadcast %47 : f32 to vector<8x128xf32>
      %49 = arith.addf %43, %48 : vector<8x128xf32>
      %c0_19 = arith.constant 0 : index
      %c0_20 = arith.constant 0 : index
      %50 = vector.load %arg5[%c0_19, %c0_20] : memref<8x128xf32, #tpu.memory_space<vmem>>, vector<8x128xf32>
      tpu.vector_store %arg5[%c0_19, %c0_20], %49 {strides = array<i32>} : memref<8x128xf32, #tpu.memory_space<vmem>>, vector<8x128xf32>,
      %c0_21 = arith.constant 0 : index
      %c0_22 = arith.constant 0 : index
      %51 = vector.load %arg6[%c0_21, %c0_22] : memref<8x32xf32, #tpu.memory_space<vmem>>, vector<8x32xf32>
      %52 = vector.shape_cast %16 : vector<16x32xf32> to vector<2x8x32xf32>
      %cst_23 = arith.constant dense<0.000000e+00> : vector<8x32xf32>
      %53 = vector.multi_reduction <add>, %52, %cst_23 [0] : vector<2x8x32xf32> to vector<8x32xf32>
      %54 = arith.addf %51, %53 : vector<8x32xf32>
      %c0_24 = arith.constant 0 : index
      %c0_25 = arith.constant 0 : index
      %55 = vector.load %arg6[%c0_24, %c0_25] : memref<8x32xf32, #tpu.memory_space<vmem>>, vector<8x32xf32>
      tpu.vector_store %arg6[%c0_24, %c0_25], %54 {strides = array<i32>} : memref<8x32xf32, #tpu.memory_space<vmem>>, vector<8x32xf32>,
    } else {
    }
    %true = arith.constant true
    %40 = arith.xori %37, %true : i1
    %41 = arith.extui %40 : i1 to i32
    %c0_i32_15 = arith.constant 0 : i32
    %42 = arith.cmpi ne, %41, %c0_i32_15 : i32
    scf.if %42 {
      %43 = tpu.iota {dimensions = array<i32: 0>} : vector<16x1xi32>
      %c16_i32_16 = arith.constant 16 : i32
      %44 = arith.muli %1, %c16_i32_16 : i32
      %45 = vector.broadcast %44 : i32 to vector<16x1xi32>
      %46 = arith.addi %45, %43 : vector<16x1xi32>
      %c16_i32_17 = arith.constant 16 : i32
      %47 = vector.broadcast %c16_i32_17 : i32 to vector<16x1xi32>
      %48 = arith.cmpi slt, %46, %47 : vector<16x1xi32>
      %c0_18 = arith.constant 0 : index
      %c0_19 = arith.constant 0 : index
      %49 = vector.load %arg5[%c0_18, %c0_19] : memref<8x128xf32, #tpu.memory_space<vmem>>, vector<8x128xf32>
      %cst_20 = arith.constant 0.000000e+00 : f32
      %50 = vector.broadcast %cst_20 : f32 to vector<16x1xf32>
      %51 = arith.select %48, %34, %50 : vector<16x1xi1>, vector<16x1xf32>
      %52 = vector.shape_cast %51 : vector<16x1xf32> to vector<1x16x1xf32>
      %cst_21 = arith.constant dense<0.000000e+00> : vector<1xf32>
      %53 = vector.multi_reduction <add>, %52, %cst_21 [1, 2] : vector<1x16x1xf32> to vector<1xf32>
      %54 = vector.shape_cast %53 : vector<1xf32> to vector<1x1x1xf32>
      %55 = vector.extract %54[0, 0, 0] : f32 from vector<1x1x1xf32>
      %56 = vector.broadcast %55 : f32 to vector<8x128xf32>
      %57 = arith.addf %49, %56 : vector<8x128xf32>
      %c0_22 = arith.constant 0 : index
      %c0_23 = arith.constant 0 : index
      %58 = vector.load %arg5[%c0_22, %c0_23] : memref<8x128xf32, #tpu.memory_space<vmem>>, vector<8x128xf32>
      tpu.vector_store %arg5[%c0_22, %c0_23], %57 {strides = array<i32>} : memref<8x128xf32, #tpu.memory_space<vmem>>, vector<8x128xf32>,
      %c0_24 = arith.constant 0 : index
      %c0_25 = arith.constant 0 : index
      %59 = vector.load %arg6[%c0_24, %c0_25] : memref<8x32xf32, #tpu.memory_space<vmem>>, vector<8x32xf32>
      %cst_26 = arith.constant 0.000000e+00 : f32
      %60 = vector.shape_cast %48 : vector<16x1xi1> to vector<16x1xi1>
      %61 = vector.broadcast %60 : vector<16x1xi1> to vector<16x32xi1>
      %62 = vector.broadcast %cst_26 : f32 to vector<16x32xf32>
      %63 = arith.select %61, %16, %62 : vector<16x32xi1>, vector<16x32xf32>
      %64 = vector.shape_cast %63 : vector<16x32xf32> to vector<2x8x32xf32>
      %cst_27 = arith.constant dense<0.000000e+00> : vector<8x32xf32>
      %65 = vector.multi_reduction <add>, %64, %cst_27 [0] : vector<2x8x32xf32> to vector<8x32xf32>
      %66 = arith.addf %59, %65 : vector<8x32xf32>
      %c0_28 = arith.constant 0 : index
      %c0_29 = arith.constant 0 : index
      %67 = vector.load %arg6[%c0_28, %c0_29] : memref<8x32xf32, #tpu.memory_space<vmem>>, vector<8x32xf32>
      tpu.vector_store %arg6[%c0_28, %c0_29], %66 {strides = array<i32>} : memref<8x32xf32, #tpu.memory_space<vmem>>, vector<8x32xf32>,
    } else {
    }
    return
  }
  func.func @transform_0(%arg0: i32, %arg1: i32) -> (i32, i32) {
    %c1_i32 = arith.constant 1 : i32
    %0 = arith.muli %arg0, %c1_i32 : i32
    %1 = arith.addi %0, %arg1 : i32
    %c0_i32 = arith.constant 0 : i32
    %2 = arith.minsi %1, %c0_i32 : i32
    %c0_i32_0 = arith.constant 0 : i32
    %c0_i32_1 = arith.constant 0 : i32
    return %2, %c0_i32_0 : i32, i32
  }
  func.func @transform_1(%arg0: i32, %arg1: i32) -> (i32, i32) {
    %c1_i32 = arith.constant 1 : i32
    %0 = arith.muli %arg0, %c1_i32 : i32
    %1 = arith.addi %0, %arg1 : i32
    %c0_i32 = arith.constant 0 : i32
    %2 = arith.minsi %1, %c0_i32 : i32
    %c0_i32_0 = arith.constant 0 : i32
    %c0_i32_1 = arith.constant 0 : i32
    return %2, %c0_i32_0 : i32, i32
  }
  func.func @transform_2(%arg0: i32, %arg1: i32) -> (i32, i32) {
    %c0_i32 = arith.constant 0 : i32
    %c0_i32_0 = arith.constant 0 : i32
    %c0_i32_1 = arith.constant 0 : i32
    return %c0_i32, %c0_i32_0 : i32, i32
  }
  func.func @transform_3(%arg0: i32, %arg1: i32) -> (i32, i32) {
    %c0_i32 = arith.constant 0 : i32
    %c0_i32_0 = arith.constant 0 : i32
    return %arg0, %c0_i32 : i32, i32
  }
  func.func @transform_4(%arg0: i32, %arg1: i32) -> (i32, i32) {
    %c0_i32 = arith.constant 0 : i32
    %c0_i32_0 = arith.constant 0 : i32
    return %arg0, %c0_i32 : i32, i32
  }
}

</mosaic_0001>

<llo_original>
// kernel: tpu_custom_call.1
$region0: #{tpu_custom_call.1}
  #allocation0 [shape = 'u32[]', space=smem, size = 0x4, offset = 0x4, fixed_abs, tag = 'smem constant byte address 0x4 - core index']
  #allocation1 [shape = 'u32[144,128]{1,0:T(1,128)}', space=vmem, size = 0x12000, scoped, tag = 'internal scratch']
  %s0 = inlined_call_operand.hbm [shape: f32[16,32], index: 0, kind: input, shape index: {}]
  %s1 = inlined_call_operand.hbm [shape: f32[16,32], index: 1, kind: input, shape index: {}]
  %s2 = inlined_call_operand.vmem [shape: f32[1,32], index: 2, kind: input, shape index: {}]
  %s3 = inlined_call_operand.hbm [shape: f32[8,128], index: 3, kind: output, shape index: {0}]
  %s4 = inlined_call_operand.hbm [shape: f32[8,32], index: 4, kind: output, shape index: {1}]
  %5 = xla_tuple %s3, %s4
  %s6 = sld [smem:[#allocation0]]
  $region50: #{tpu_custom_call.1} parent=0
    _
  %s8 = ssub.s32 1, %s6
  %s9 = scalar_select 0, %s8, %s6
  $region1: #{tpu_custom_call.1} parent=0
    #allocation2 [shape = 'u8[8192]{0}', space=vmem, size = 0x2000, scoped, tag = 'input window, operand 0, single buffered']
    #allocation3 [shape = 's32[1]{0}', space=sflag, size = 0x4, scoped, tag = 'scoped memory for tpu_custom_call.1']
    #allocation4 [shape = 's32[1]{0}', space=sflag, size = 0x4, scoped, tag = 'scoped memory for tpu_custom_call.1']
    #allocation5 [shape = 'u8[8192]{0}', space=vmem, size = 0x2000, scoped, tag = 'input window, operand 1, single buffered']
    #allocation6 [shape = 's32[1]{0}', space=sflag, size = 0x4, scoped, tag = 'scoped memory for tpu_custom_call.1']
    #allocation7 [shape = 'u8[4096]{0}', space=vmem, size = 0x1000, scoped, tag = 'output window, operand 0, single buffered']
    #allocation8 [shape = 'u8[4096]{0}', space=vmem, size = 0x1000, scoped, tag = 'output window, operand 1, single buffered']
    #allocation9 [shape = 's32[1]{0}', space=sflag, size = 0x4, scoped, tag = 'scoped memory for tpu_custom_call.1']
    %10 = vsyncpa [#allocation3], 0
    %11 = vsyncpa [#allocation6], 0
    %12 = vsyncpa [#allocation4], 0
    %13 = vsyncpa [#allocation9], 0
    // Predicated region
    $region2: #{tpu_custom_call.1} parent=1 // pred_check
      _
    $region3: #{tpu_custom_call.1} parent=1 // pred_check_branch
      %15 = sbr.rel (0) target = $region5
    $region4: #{tpu_custom_call.1} parent=1 // pred_region
      %s16 = sadd.s32 0, 0
      %p17 = scmp.lt.s32.totalorder %s16, 0
      %s18 = scalar_select %p17, %s16, 0
      %s19 = smul.u32 2, %s18
      %s21 = ssub.s32 256, 256
      %22 = vsyncadd [#allocation3], %s21
      %s23 = smul.addr %s19, 128
      %s24 = scalar_lea.hbm %s0, %s23
      %s25 = sshll.u32 [#allocation2], 4
      %s26 = int_to_ptr.vmem [resolvable:$true] %s25
      %31 = dma.hbm_to_vmem [thread:$0]  %s24, 256, %s26, [#allocation3], 128, 128, 8
    $region5: #{tpu_custom_call.1} parent=1 // pred_fallthru
      _
    // Predicated region
    $region6: #{tpu_custom_call.1} parent=1 // pred_check
      _
    $region7: #{tpu_custom_call.1} parent=1 // pred_check_branch
      %33 = sbr.rel (0) target = $region9
    $region8: #{tpu_custom_call.1} parent=1 // pred_region
      %s34 = sadd.s32 0, 0
      %p35 = scmp.lt.s32.totalorder %s34, 0
      %s36 = scalar_select %p35, %s34, 0
      %s37 = smul.u32 2, %s36
      %s39 = ssub.s32 256, 256
      %40 = vsyncadd [#allocation6], %s39
      %s41 = smul.addr %s37, 128
      %s42 = scalar_lea.hbm %s1, %s41
      %s43 = sshll.u32 [#allocation5], 4
      %s44 = int_to_ptr.vmem [resolvable:$true] %s43
      %49 = dma.hbm_to_vmem [thread:$0]  %s42, 256, %s44, [#allocation6], 128, 128, 8
    $region9: #{tpu_custom_call.1} parent=1 // pred_fallthru
      _
    // Predicated region
    $region10: #{tpu_custom_call.1} parent=1 // pred_check
      _
    $region11: #{tpu_custom_call.1} parent=1 // pred_check_branch
      %51 = sbr.rel (0) target = $region13
    $region12: #{tpu_custom_call.1} parent=1 // pred_region
      _
    $region13: #{tpu_custom_call.1} parent=1 // pred_fallthru
      _
    // Predicated region
    $region14: #{tpu_custom_call.1} parent=1 // pred_check
      _
    $region15: #{tpu_custom_call.1} parent=1 // pred_check_branch
      %53 = sbr.rel (0) target = $region17
    $region16: #{tpu_custom_call.1} parent=1 // pred_region
      %54 = dma.done [#allocation3], 256
    $region17: #{tpu_custom_call.1} parent=1 // pred_fallthru
      _
    // Predicated region
    $region18: #{tpu_custom_call.1} parent=1 // pred_check
      _
    $region19: #{tpu_custom_call.1} parent=1 // pred_check_branch
      %56 = sbr.rel (0) target = $region21
    $region20: #{tpu_custom_call.1} parent=1 // pred_region
      %57 = dma.done [#allocation6], 256
    $region21: #{tpu_custom_call.1} parent=1 // pred_fallthru
      _
    %s58 = sadd.s32 0, 0
    %p59 = scmp.lt.s32.totalorder %s58, 0
    %s60 = scalar_select %p59, %s58, 0
    %s61 = smul.u32 2, %s60
    %s62 = sadd.s32 0, 0
    %p63 = scmp.lt.s32.totalorder %s62, 0
    %s64 = scalar_select %p63, %s62, 0
    %s65 = smul.u32 2, %s64
    %s66 = sadd.s32 0, 0
    %p67 = scmp.eq.s32.totalorder 0, 0
    // Predicated region
    $region22: #{tpu_custom_call.1} parent=1 // pred_check
      %p68 = pneg %p67
    $region23: #{tpu_custom_call.1} parent=1 // pred_check_branch
      %70 = sbr.rel (%p68) target = $region25
    $region24: #{tpu_custom_call.1} parent=1 // pred_region
      %71 = vst [vmem:[#allocation7] sm:$0xff] 0.0
      %vm72 = vcmask 261120
      %73 = vst.msk [vmem:[#allocation8] sm:$0xff] %vm72, 0.0
    $region25: #{tpu_custom_call.1} parent=1 // pred_fallthru
      _
    %v74 = vld [vmem:[#allocation2] sm:$0xff]
    %v75 = vld [vmem:[#allocation2 + $0x8] sm:$0xff]
    %v76 = vmul.f32 %v74, 10.0
    %v77 = vmul.f32 %v75, 10.0
    %vm78 = vcmask 261120
    %v79 = vsel %vm78, %v76, -inf
    %80 = vmax.xlane.f32.xlu0 %v79
    %v81 = vpop.xlane.xlu0 %80
    %v82 = vsel %vm78, %v77, -inf
    %83 = vmax.xlane.f32.xlu0 %v82
    %v84 = vpop.xlane.xlu0 %83
    %v85 = vsub.f32 %v76, %v81
    %v86 = vsub.f32 %v77, %v84
    %v87 = vmul.f32 %v85, 1.442695
    %v88 = vpow.pop %v87
    %v89 = vmul.f32 %v86, 1.442695
    %v90 = vpow.pop %v89
    %v91 = vsel %vm78, %v88, 0.0
    %92 = vadd.xlane.f32.xlu0 %v91
    %v93 = vpop.xlane.xlu0 %92
    %v94 = vsel %vm78, %v90, 0.0
    %95 = vadd.xlane.f32.xlu0 %v94
    %v96 = vpop.xlane.xlu0 %95
    %v97 = vlog2.pop %v93
    %v98 = vmul.f32 %v97, 0.6931472
    %v99 = vlog2.pop %v96
    %v100 = vmul.f32 %v99, 0.6931472
    %v101 = vld [vmem:[#allocation5] sm:$0xff]
    %v102 = vld [vmem:[#allocation5 + $0x8] sm:$0xff]
    %v103 = vld [vmem:[%s2] sm:$0x1]
    %v105 = vlaneseq
    %v106 = vshrl.u32 %v105, 7
    %v107 = vsub.s32 0, %v106
    %v108 = vrot.slane %v103, %v107
    %v110 = vsub.f32 %v101, %v108
    %v111 = vsub.f32 %v102, %v108
    %v112 = vmul.f32 %v110, 25.0
    %v113 = vmul.f32 %v111, 25.0
    %v114 = vsel %vm78, %v112, -inf
    %115 = vmax.xlane.f32.xlu0 %v114
    %v116 = vpop.xlane.xlu0 %115
    %v117 = vsel %vm78, %v113, -inf
    %118 = vmax.xlane.f32.xlu0 %v117
    %v119 = vpop.xlane.xlu0 %118
    %v120 = vsub.f32 %v112, %v116
    %v121 = vsub.f32 %v113, %v119
    %v122 = vmul.f32 %v120, 1.442695
    %v123 = vpow.pop %v122
    %v124 = vmul.f32 %v121, 1.442695
    %v125 = vpow.pop %v124
    %v126 = vsel %vm78, %v123, 0.0
    %127 = vadd.xlane.f32.xlu0 %v126
    %v128 = vpop.xlane.xlu0 %127
    %v129 = vsel %vm78, %v125, 0.0
    %130 = vadd.xlane.f32.xlu0 %v129
    %v131 = vpop.xlane.xlu0 %130
    %v132 = vmul.f32 %v123, %v85
    %v133 = vmul.f32 %v125, %v86
    %v134 = vsel %vm78, %v132, 0.0
    %135 = vadd.xlane.f32.xlu0 %v134
    %v136 = vpop.xlane.xlu0 %135
    %v137 = vsel %vm78, %v133, 0.0
    %138 = vadd.xlane.f32.xlu0 %v137
    %v139 = vpop.xlane.xlu0 %138
    %v140 = vrcp.pop %v128
    %v141 = vrcp.pop %v131
    %v142 = vmul.f32 %v136, %v140
    %v143 = vmul.f32 %v139, %v141
    %v144 = vsub.f32 %v98, %v142
    %v145 = vsub.f32 %v100, %v143
    %s146 = sadd.s32 %s66, 1
    %s147 = smul.u32 %s146, 16
    %p148 = scmp.le.s32.totalorder %s147, 16
    // Predicated region
    $region26: #{tpu_custom_call.1} parent=1 // pred_check
      %p149 = pneg %p148
    $region27: #{tpu_custom_call.1} parent=1 // pred_check_branch
      %151 = sbr.rel (%p149) target = $region29
    $region28: #{tpu_custom_call.1} parent=1 // pred_region
      %v152 = vld [vmem:[#allocation7] sm:$0xff]
      %vm153 = vcmask 7168
      %v154 = vsel %vm153, %v144, 0.0
      %v155 = vsel %vm153, %v145, 0.0
      %v156 = vadd.f32 %v154, %v155
      %157 = vadd.xlane.f32.xlu0 %v156
      %v158 = vpop.xlane.xlu0 %157
      %v159 = vrot.slane %v158, 4
      %v160 = vadd.f32 %v158, %v159
      %v161 = vrot.slane %v160, 2
      %v162 = vadd.f32 %v160, %v161
      %v163 = vrot.slane %v162, 1
      %v164 = vadd.f32 %v162, %v163
      %s165 = vtos %v164
      %v166 = vstv %s165
      %v167 = vadd.f32 %v152, %v166
      %168 = vst [vmem:[#allocation7] sm:$0xff] %v167
      %v169 = vld [vmem:[#allocation8] sm:$0xff]
      %v170 = vsel %vm78, %v101, 0.0
      %v171 = vsel %vm78, %v102, 0.0
      %v172 = vadd.f32 %v170, %v171
      %v173 = vadd.f32 %v169, %v172
      %174 = vst.msk [vmem:[#allocation8] sm:$0xff] %vm78, %v173
    $region29: #{tpu_custom_call.1} parent=1 // pred_fallthru
      _
    %p175 = scmp.gt.s32.totalorder %s147, 16
    // Predicated region
    $region30: #{tpu_custom_call.1} parent=1 // pred_check
      %p176 = pneg %p175
    $region31: #{tpu_custom_call.1} parent=1 // pred_check_branch
      %178 = sbr.rel (%p176) target = $region33
    $region32: #{tpu_custom_call.1} parent=1 // pred_region
      %v179 = vlaneseq
      %v180 = vshrl.u32 %v179, 7
      %v181 = vadd.s32 %v180, 8
      %s182 = smul.u32 %s66, 16
      %v183 = vstv %s182
      %v184 = vadd.s32 %v183, %v180
      %v185 = vadd.s32 %v183, %v181
      %vm186 = vcmp.lt.s32.totalorder %v184, 16
      %vm187 = vcmp.lt.s32.totalorder %v185, 16
      %v188 = vld [vmem:[#allocation7] sm:$0xff]
      %v189 = vsel %vm186, %v144, 0.0
      %v190 = vsel %vm187, %v145, 0.0
      %vm191 = vcmask 7168
      %v192 = vsel %vm191, %v189, 0.0
      %v193 = vsel %vm191, %v190, 0.0
      %v194 = vadd.f32 %v192, %v193
      %195 = vadd.xlane.f32.xlu0 %v194
      %v196 = vpop.xlane.xlu0 %195
      %v197 = vrot.slane %v196, 4
      %v198 = vadd.f32 %v196, %v197
      %v199 = vrot.slane %v198, 2
      %v200 = vadd.f32 %v198, %v199
      %v201 = vrot.slane %v200, 1
      %v202 = vadd.f32 %v200, %v201
      %s203 = vtos %v202
      %v204 = vstv %s203
      %v205 = vadd.f32 %v188, %v204
      %206 = vst [vmem:[#allocation7] sm:$0xff] %v205
      %v207 = vld [vmem:[#allocation8] sm:$0xff]
      %v208 = vsel %vm186, 1, 0
      %v209 = vsel %vm187, 1, 0
      %vm210 = vcmp.eq.s32.totalorder %v208, 1
      %vm211 = vcmp.eq.s32.totalorder %v209, 1
      %v212 = vsel %vm210, %v101, 0.0
      %v213 = vsel %vm211, %v102, 0.0
      %v214 = vsel %vm78, %v212, 0.0
      %v215 = vsel %vm78, %v213, 0.0
      %v216 = vadd.f32 %v214, %v215
      %v217 = vadd.f32 %v207, %v216
      %218 = vst.msk [vmem:[#allocation8] sm:$0xff] %vm78, %v217
    $region33: #{tpu_custom_call.1} parent=1 // pred_fallthru
      _
    // Predicated region
    $region34: #{tpu_custom_call.1} parent=1 // pred_check
      _
    $region35: #{tpu_custom_call.1} parent=1 // pred_check_branch
      %220 = sbr.rel (0) target = $region37
    $region36: #{tpu_custom_call.1} parent=1 // pred_region
      %s222 = ssub.s32 128, 128
      %223 = vsyncadd [#allocation4], %s222
      %s225 = sshll.u32 [#allocation7], 4
      %s226 = int_to_ptr.vmem [resolvable:$true] %s225
      %228 = dma.vmem_to_hbm [thread:$0]  %s226, 128, %s3, [#allocation4]
    $region37: #{tpu_custom_call.1} parent=1 // pred_fallthru
      _
    // Predicated region
    $region38: #{tpu_custom_call.1} parent=1 // pred_check
      _
    $region39: #{tpu_custom_call.1} parent=1 // pred_check_branch
      %230 = sbr.rel (0) target = $region41
    $region40: #{tpu_custom_call.1} parent=1 // pred_region
      %s232 = ssub.s32 128, 128
      %233 = vsyncadd [#allocation9], %s232
      %s235 = sshll.u32 [#allocation8], 4
      %s236 = int_to_ptr.vmem [resolvable:$true] %s235
      %238 = dma.vmem_to_hbm [thread:$0]  %s236, 128, %s4, [#allocation9]
    $region41: #{tpu_custom_call.1} parent=1 // pred_fallthru
      _
    // Predicated region
    $region42: #{tpu_custom_call.1} parent=1 // pred_check
      _
    $region43: #{tpu_custom_call.1} parent=1 // pred_check_branch
      %240 = sbr.rel (0) target = $region45
    $region44: #{tpu_custom_call.1} parent=1 // pred_region
      %241 = dma.done [#allocation4], 128
    $region45: #{tpu_custom_call.1} parent=1 // pred_fallthru
      _
    // Predicated region
    $region46: #{tpu_custom_call.1} parent=1 // pred_check
      _
    $region47: #{tpu_custom_call.1} parent=1 // pred_check_branch
      %243 = sbr.rel (0) target = $region49
    $region48: #{tpu_custom_call.1} parent=1 // pred_region
      %244 = dma.done [#allocation9], 128
    $region49: #{tpu_custom_call.1} parent=1 // pred_fallthru
      _
    %245 = vsyncpa [#allocation3], 1
    %246 = vsyncpa [#allocation6], 1
    %247 = vsyncpa [#allocation4], 1
    %248 = vsyncpa [#allocation9], 1

</llo_original>
